<compile_context>
chip_gen: v6e
topology: v6e:2x2x1
jax: 0.10.0
libtpu: 0.0.40
codegen_flags: <defaults>
</compile_context>

<pallas_src>
import functools

import jax
import jax.numpy as jnp
from jax.experimental import pallas as pl
from jax.experimental.pallas import tpu as pltpu

_BLOCK_BYTES = 3 << 20          # per-block budget (see header note)
_LANE_CAP = 4096                # max lane-tile width (elements)
_MEGACORE_MIN_BYTES = 2 << 20   # below this, don't bother splitting for v7x


def _round_up(v: int, m: int) -> int:
    return ((v + m - 1) // m) * m


# ---------------------------------------------------------------------------
# Kernels
# ---------------------------------------------------------------------------

def _copy_prefix_kernel(x_ref, o_ref):
    # Aligned path: in/out blocks have identical width -> slice is a no-op,
    # this is a straight copy.  Small path: in block is full-L, out block is
    # full-L_out -> prefix slice.
    o_ref[...] = x_ref[:, : o_ref.shape[-1]]


def _packed_chomp_kernel(x_ref, o_ref, *, k, l, l_out):
    # K rows packed along lanes: block is (tr, K*L) in, (tr, K*L_out) out.
    # Copy the first L_out columns of each packed row (static slices only;
    # unrolled, K is small).
    for i in range(k):
        o_ref[:, i * l_out:(i + 1) * l_out] = x_ref[:, i * l: i * l + l_out]


# ---------------------------------------------------------------------------
# Tiling helpers
# ---------------------------------------------------------------------------

def _sublane(itemsize: int) -> int:
    # dtype sublane packing: 8 for f32, 16 for bf16, 32 for int8.
    return max(8, 32 // max(itemsize, 1))


def _row_tile(n_rows: int, lane_width: int, itemsize: int, sublane: int) -> int:
    cap = (_BLOCK_BYTES // (lane_width * itemsize)) // sublane * sublane
    cap = max(sublane, cap)
    return n_rows if n_rows <= cap else cap


def _maybe_split_rows(tr, n_rows, n_lane_blocks, total_bytes, sublane):
    """Guarantee >=2 blocks on a parallel axis for non-trivial copies (v7x)."""
    if (total_bytes > _MEGACORE_MIN_BYTES
            and n_lane_blocks * pl.cdiv(n_rows, tr) < 2
            and n_rows >= 2 * sublane):
        return _round_up(pl.cdiv(n_rows, 2), sublane)
    return tr


def _pick_pack_factor(rows: int, l: int, l_out: int):
    """Smallest K dividing `rows` with K*L_out >= 128 and K*L <= lane cap."""
    if l_out <= 0 or l > _LANE_CAP:
        return None
    target = -(-128 // l_out)              # ceil(128 / l_out)
    k_max = min(rows, _LANE_CAP // l)
    for k in range(max(2, target), k_max + 1):
        if rows % k == 0:
            return k
    return None


# ---------------------------------------------------------------------------
# Pallas-call paths
# ---------------------------------------------------------------------------

def _chomp_aligned(x2, rows, l, l_out, itemsize, sublane):
    # Lane tile covers as much of L_out as possible (fewer, longer DMA
    # segments on the strided input); input uses the same map/width so the
    # chomped tail is never read.
    tl = min(_LANE_CAP, _round_up(l_out, 128))
    tr = _row_tile(rows, tl, itemsize, sublane)
    total_bytes = rows * l_out * itemsize
    tr = _maybe_split_rows(tr, rows, pl.cdiv(l_out, tl), total_bytes, sublane)

    grid = (pl.cdiv(rows, tr), pl.cdiv(l_out, tl))
    return pl.pallas_call(
        _copy_prefix_kernel,
        out_shape=jax.ShapeDtypeStruct((rows, l_out), x2.dtype),
        grid_spec=pltpu.PrefetchScalarGridSpec(
            num_scalar_prefetch=0,
            grid=grid,
            in_specs=[pl.BlockSpec((tr, tl), lambda i, j: (i, j))],
            out_specs=pl.BlockSpec((tr, tl), lambda i, j: (i, j)),
        ),
        compiler_params=pltpu.CompilerParams(
            dimension_semantics=("parallel", "parallel")),
        cost_estimate=pl.CostEstimate(
            flops=0, transcendentals=0,
            bytes_accessed=2 * rows * l_out * itemsize),
    )(x2)


def _chomp_packed(x2, rows, l, l_out, itemsize, sublane, k):
    groups = rows // k
    in_w, out_w = k * l, k * l_out
    x3 = x2.reshape(groups, in_w)

    tr = _row_tile(groups, in_w, itemsize, sublane)
    total_bytes = rows * l_out * itemsize
    tr = _maybe_split_rows(tr, groups, 1, total_bytes, sublane)

    kernel = functools.partial(_packed_chomp_kernel, k=k, l=l, l_out=l_out)
    out3 = pl.pallas_call(
        kernel,
        out_shape=jax.ShapeDtypeStruct((groups, out_w), x2.dtype),
        grid_spec=pltpu.PrefetchScalarGridSpec(
            num_scalar_prefetch=0,
            grid=(pl.cdiv(groups, tr),),
            in_specs=[pl.BlockSpec((tr, in_w), lambda i: (i, 0))],
            out_specs=pl.BlockSpec((tr, out_w), lambda i: (i, 0)),
        ),
        compiler_params=pltpu.CompilerParams(
            dimension_semantics=("parallel",)),
        cost_estimate=pl.CostEstimate(
            flops=0, transcendentals=0,
            bytes_accessed=rows * (l + l_out) * itemsize),
    )(x3)
    return out3.reshape(rows, l_out)


def _chomp_small(x2, rows, l, l_out, itemsize, sublane):
    # Tiny L_out, no clean packing factor: full-extent lane blocks, tile rows.
    tr = _row_tile(rows, l, itemsize, sublane)
    total_bytes = rows * l_out * itemsize
    tr = _maybe_split_rows(tr, rows, 1, total_bytes, sublane)

    return pl.pallas_call(
        _copy_prefix_kernel,
        out_shape=jax.ShapeDtypeStruct((rows, l_out), x2.dtype),
        grid_spec=pltpu.PrefetchScalarGridSpec(
            num_scalar_prefetch=0,
            grid=(pl.cdiv(rows, tr),),
            in_specs=[pl.BlockSpec((tr, l), lambda i: (i, 0))],
            out_specs=pl.BlockSpec((tr, l_out), lambda i: (i, 0)),
        ),
        compiler_params=pltpu.CompilerParams(
            dimension_semantics=("parallel",)),
        cost_estimate=pl.CostEstimate(
            flops=0, transcendentals=0,
            bytes_accessed=rows * (l + l_out) * itemsize),
    )(x2)


# ---------------------------------------------------------------------------
# Public wrapper (Chomp1d.forward)
# ---------------------------------------------------------------------------

def chomp1d(x: jax.Array, chomp_size: int) -> jax.Array:
    """Pallas implementation of Chomp1d.forward: x[:, :, :-chomp_size]."""
    n, c, l = x.shape
    if not (0 < chomp_size < l):
        # chomp_size == 0 (PyTorch: empty tensor) is unsupported by design;
        # TCN always uses padding > 0.
        raise ValueError("chomp_size must satisfy 0 < chomp_size < L")
    l_out = l - chomp_size
    rows = n * c
    x2 = x.reshape(rows, l)

    itemsize = jnp.dtype(x.dtype).itemsize
    sublane = _sublane(itemsize)

    if l_out >= 128:
        out2 = _chomp_aligned(x2, rows, l, l_out, itemsize, sublane)
    else:
        k = _pick_pack_factor(rows, l, l_out)
        if k is not None:
            out2 = _chomp_packed(x2, rows, l, l_out, itemsize, sublane, k)
        else:
            out2 = _chomp_small(x2, rows, l, l_out, itemsize, sublane)

    return out2.reshape(n, c, l_out)


if __name__ == "__main__":
    key = jax.random.PRNGKey(0)
    k1, k2, k3, k4 = jax.random.split(key, 4)

    # 1) Typical small TCN activation (NCL), L_out < 128, no packing factor.
    x1 = jax.random.normal(k1, (2, 4, 16), dtype=jnp.float32)
    o1 = jax.block_until_ready(chomp1d(x1, 3))
    assert o1.shape == (2, 4, 13), o1.shape
    assert jnp.array_equal(o1, x1[:, :, :-3]), "mismatch (small path)"

    # 2) Lane-aligned path, L_out not a multiple of 128 (masked tail lanes).
    x2 = jax.random.normal(k2, (2, 8, 512), dtype=jnp.float32)
    o2 = jax.block_until_ready(chomp1d(x2, 5))
    assert o2.shape == (2, 8, 507), o2.shape
    assert jnp.array_equal(o2, x2[:, :, :-5]), "mismatch (aligned path)"

    # 3) Aligned path where the lane tile rounds past L (OOB-padded input
    #    block): L=133, chomp=3 -> L_out=130, tile=256.
    x3 = jax.random.normal(k3, (2, 4, 133), dtype=jnp.float32)
    o3 = jax.block_until_ready(chomp1d(x3, 3))
    assert o3.shape == (2, 4, 130), o3.shape
    assert jnp.array_equal(o3, x3[:, :, :-3]), "mismatch (rounded-tile path)"

    # 4) Many rows, short L -> row-packed lane-dense path (K = 8 here).
    x4 = jax.random.normal(k4, (4, 32, 24), dtype=jnp.float32)
    o4 = jax.block_until_ready(chomp1d(x4, 5))
    assert o4.shape == (4, 32, 19), o4.shape
    assert jnp.array_equal(o4, x4[:, :, :-5]), "mismatch (packed path)"

    print("KERNEL_OK")
</pallas_src>

<mosaic_0001>
module attributes {stable_mosaic.version = 11 : i64} {
  func.func @_copy_prefix_kernel(%arg0: i32, %arg1: memref<8x16xf32, #tpu.memory_space<vmem>>, %arg2: memref<8x13xf32, #tpu.memory_space<vmem>>) attributes {dimension_semantics = [#tpu.dimension_semantics<parallel>], iteration_bounds = array<i64: 1>, scalar_prefetch = 0 : i64, scratch_operands = 0 : i64, tpu.core_type = #tpu.core_type<tc>, window_params = [{transform_indices = @transform_0, window_bounds = array<i64: 8, 16>}, {transform_indices = @transform_1, window_bounds = array<i64: 8, 13>}]} {
    %c0 = arith.constant 0 : index
    %c0_0 = arith.constant 0 : index
    %0 = vector.load %arg1[%c0, %c0_0] : memref<8x16xf32, #tpu.memory_space<vmem>>, vector<8x13xf32>
    %c0_1 = arith.constant 0 : index
    %c0_2 = arith.constant 0 : index
    %1 = vector.load %arg2[%c0_1, %c0_2] : memref<8x13xf32, #tpu.memory_space<vmem>>, vector<8x13xf32>
    tpu.vector_store %arg2[%c0_1, %c0_2], %0 {strides = array<i32>} : memref<8x13xf32, #tpu.memory_space<vmem>>, vector<8x13xf32>,
    return
  }
  func.func @transform_0(%arg0: i32) -> (i32, i32) {
    %c0_i32 = arith.constant 0 : i32
    %c0_i32_0 = arith.constant 0 : i32
    return %arg0, %c0_i32 : i32, i32
  }
  func.func @transform_1(%arg0: i32) -> (i32, i32) {
    %c0_i32 = arith.constant 0 : i32
    %c0_i32_0 = arith.constant 0 : i32
    return %arg0, %c0_i32 : i32, i32
  }
}

</mosaic_0001>

<llo_original>
// kernel: tpu_custom_call.1
$region0: #{tpu_custom_call.1}
  #allocation0 [shape = 'u32[]', space=smem, size = 0x4, offset = 0x4, fixed_abs, tag = 'smem constant byte address 0x4 - core index']
  #allocation1 [shape = 'u32[144,128]{1,0:T(1,128)}', space=vmem, size = 0x12000, scoped, tag = 'internal scratch']
  %s0 = inlined_call_operand.hbm [shape: f32[8,16], index: 0, kind: input, shape index: {}]
  %s1 = inlined_call_operand.hbm [shape: f32[8,13], index: 1, kind: output, shape index: {}]
  %s2 = sld [smem:[#allocation0]]
  $region18: #{tpu_custom_call.1} parent=0
    _
  %s4 = ssub.s32 1, %s2
  %s5 = scalar_select 0, %s4, %s2
  $region1: #{tpu_custom_call.1} parent=0
    #allocation2 [shape = 'u8[4096]{0}', space=vmem, size = 0x1000, scoped, tag = 'input window, operand 0, single buffered']
    #allocation3 [shape = 's32[1]{0}', space=sflag, size = 0x4, scoped, tag = 'scoped memory for tpu_custom_call.1']
    #allocation4 [shape = 's32[1]{0}', space=sflag, size = 0x4, scoped, tag = 'scoped memory for tpu_custom_call.1']
    #allocation5 [shape = 'u8[4096]{0}', space=vmem, size = 0x1000, scoped, tag = 'output window, operand 0, single buffered']
    %6 = vsyncpa [#allocation3], 0
    %7 = vsyncpa [#allocation4], 0
    // Predicated region
    $region2: #{tpu_custom_call.1} parent=1 // pred_check
      _
    $region3: #{tpu_custom_call.1} parent=1 // pred_check_branch
      %9 = sbr.rel (0) target = $region5
    $region4: #{tpu_custom_call.1} parent=1 // pred_region
      %s11 = ssub.s32 128, 128
      %12 = vsyncadd [#allocation3], %s11
      %s14 = sshll.u32 [#allocation2], 4
      %s15 = int_to_ptr.vmem [resolvable:$true] %s14
      %17 = dma.hbm_to_vmem [thread:$0]  %s0, 128, %s15, [#allocation3]
    $region5: #{tpu_custom_call.1} parent=1 // pred_fallthru
      _
    // Predicated region
    $region6: #{tpu_custom_call.1} parent=1 // pred_check
      _
    $region7: #{tpu_custom_call.1} parent=1 // pred_check_branch
      %19 = sbr.rel (0) target = $region9
    $region8: #{tpu_custom_call.1} parent=1 // pred_region
      %20 = dma.done [#allocation3], 128
    $region9: #{tpu_custom_call.1} parent=1 // pred_fallthru
      _
    %v21 = vld [vmem:[#allocation2] sm:$0xff]
    %vm22 = vcmask 105472
    %23 = vst.msk [vmem:[#allocation5] sm:$0xff] %vm22, %v21
    // Predicated region
    $region10: #{tpu_custom_call.1} parent=1 // pred_check
      _
    $region11: #{tpu_custom_call.1} parent=1 // pred_check_branch
      %25 = sbr.rel (0) target = $region13
    $region12: #{tpu_custom_call.1} parent=1 // pred_region
      %s27 = ssub.s32 128, 128
      %28 = vsyncadd [#allocation4], %s27
      %s30 = sshll.u32 [#allocation5], 4
      %s31 = int_to_ptr.vmem [resolvable:$true] %s30
      %33 = dma.vmem_to_hbm [thread:$0]  %s31, 128, %s1, [#allocation4]
    $region13: #{tpu_custom_call.1} parent=1 // pred_fallthru
      _
    // Predicated region
    $region14: #{tpu_custom_call.1} parent=1 // pred_check
      _
    $region15: #{tpu_custom_call.1} parent=1 // pred_check_branch
      %35 = sbr.rel (0) target = $region17
    $region16: #{tpu_custom_call.1} parent=1 // pred_region
      %36 = dma.done [#allocation4], 128
    $region17: #{tpu_custom_call.1} parent=1 // pred_fallthru
      _
    %37 = vsyncpa [#allocation3], 1
    %38 = vsyncpa [#allocation4], 1

</llo_original>
